<compile_context>
chip_gen: v7x
topology: tpu7x:2x2x1
jax: 0.10.0
libtpu: 0.0.40
codegen_flags: <defaults>
</compile_context>

<pallas_src>
import itertools

import jax
import jax.numpy as jnp
from jax.experimental import pallas as pl
from jax.experimental.pallas import tpu as pltpu


def afm_kernel(emb_ref, wide_ref, s_row_ref, s_col_ref, w_blk_ref, b_rep_ref,
               h_mat_ref, p_mat_ref, out_ref):
    """One batch tile; all activations carry batch on the lane axis.

    emb_ref   : [F*E, TB]   per-field embeddings, field-major stacked
    wide_ref  : [1, TB]     relu(X @ Ww + bw), precomputed in XLA
    s_row_ref : [P*E, F*E]  0/1 selection  (row side of each pair)
    s_col_ref : [P*E, F*E]  0/1 selection  (col side of each pair)
    w_blk_ref : [P*A, P*E]  block-diag attention_W^T
    b_rep_ref : [P*A, 1]    attention_b tiled per pair
    h_mat_ref : [P, P*A]    block-diag projection_h^T
    p_mat_ref : [P, P*E]    block-diag projection_p^T
    out_ref   : [1, TB]     sigmoid probabilities (lane-dense)
    """
    f32 = jnp.float32
    emb = emb_ref[...].astype(f32)                                     # [F*E, TB]
    wide = wide_ref[...].astype(f32)                                   # [1, TB]

    # Pair expansion on the MXU (selection matrices) -> fully packed tiles.
    rows_e = jnp.dot(s_row_ref[...], emb, preferred_element_type=f32)  # [P*E, TB]
    cols_e = jnp.dot(s_col_ref[...], emb, preferred_element_type=f32)  # [P*E, TB]
    bi = rows_e * cols_e                                               # [P*E, TB]  VPU

    # Fused attention MLP: one matmul for all P pairs (N = TB fills the MXU).
    att = jnp.dot(w_blk_ref[...], bi, preferred_element_type=f32)      # [P*A, TB]
    att = jnp.maximum(att + b_rep_ref[...], 0.0)                       # ReLU

    # Per-pair attention logits (projection_h fused into H_mat) + softmax.
    logits = jnp.dot(h_mat_ref[...], att, preferred_element_type=f32)  # [P, TB]
    m = jnp.max(logits, axis=0, keepdims=True)
    ex = jnp.exp(logits - m)
    score = ex * pl.reciprocal(jnp.sum(ex, axis=0, keepdims=True), approx=True)
    # TODO(synk): nn.Dropout layers treated as identity (inference mode).

    # projection_p fused into P_mat: u[p] = <bi_p, proj_p>; then weight by score.
    u = jnp.dot(p_mat_ref[...], bi, preferred_element_type=f32)        # [P, TB]
    afm_logit = jnp.sum(score * u, axis=0, keepdims=True)              # [1, TB]

    z = wide + afm_logit
    out_ref[...] = 1.0 / (1.0 + jnp.exp(-z))                           # exact sigmoid


def afm_forward(X, emb_tables, sparse_feats, feature_index, params, *,
                tile_b=2048, storage_dtype=jnp.float32):
    """X: [B, D] float32.  Returns [B] float32 sigmoid probabilities."""
    B, D = X.shape
    E = next(iter(emb_tables.values())).shape[1]
    F = len(sparse_feats)
    A = params["attention_W"].shape[1]

    pairs = list(itertools.combinations(range(F), 2))
    P = len(pairs)
    rows = jnp.array([r for r, _ in pairs], jnp.int32)
    cols = jnp.array([c for _, c in pairs], jnp.int32)

    # --- tiny resident block matrices (built once; constant index_maps) ---
    eye_p = jnp.eye(P, dtype=jnp.float32)
    eye_e = jnp.eye(E, dtype=jnp.float32)
    s_row = jnp.kron(jax.nn.one_hot(rows, F, dtype=jnp.float32), eye_e)  # [P*E, F*E]
    s_col = jnp.kron(jax.nn.one_hot(cols, F, dtype=jnp.float32), eye_e)  # [P*E, F*E]
    w_blk = jnp.kron(eye_p, params["attention_W"].T)                     # [P*A, P*E]
    b_rep = jnp.tile(params["attention_b"], P).reshape(P * A, 1)         # [P*A, 1]
    h_mat = jnp.kron(eye_p, params["projection_h"].T)                    # [P, P*A]
    p_mat = jnp.kron(eye_p, params["projection_p"].T)                    # [P, P*E]

    # --- wide / linear part in plain XLA (trivial GEMV) -> lane-dense row ---
    wide = jax.nn.relu(X @ params["wide_W"] + params["wide_b"])[:, 0]    # [B]
    # TODO(synk): nn.Dropout on the wide logit treated as identity (inference).

    # --- embedding gather directly in [E, B] layout (no activation transpose) ---
    emb_rows = []
    for name in sparse_feats:
        ids = X[:, feature_index[name]].astype(jnp.int32)
        emb_rows.append(jnp.take(emb_tables[name].T, ids, axis=1))       # [E, B]
    emb_flat = jnp.concatenate(emb_rows, axis=0)                         # [F*E, B]

    # --- batch tiling: big lane-dense tiles, multiple of 256, >=2 steps when possible
    tb = min(max(256, (tile_b // 256) * 256),
             ((pl.cdiv(B, 2) + 255) // 256) * 256)
    b_pad = pl.cdiv(B, tb) * tb
    pad = b_pad - B
    if pad:
        emb_flat = jnp.pad(emb_flat, ((0, 0), (0, pad)))
        wide = jnp.pad(wide, (0, pad))
    emb_flat = emb_flat.astype(storage_dtype)
    wide_row = wide.reshape(1, b_pad).astype(storage_dtype)

    grid = (b_pad // tb,)

    out = pl.pallas_call(
        afm_kernel,
        out_shape=jax.ShapeDtypeStruct((1, b_pad), jnp.float32),
        grid=grid,
        in_specs=[
            pl.BlockSpec((F * E, tb), lambda i: (0, i)),        # embeddings (batch tile)
            pl.BlockSpec((1, tb), lambda i: (0, i)),            # wide logit row
            pl.BlockSpec((P * E, F * E), lambda i: (0, 0)),     # S_row   (resident)
            pl.BlockSpec((P * E, F * E), lambda i: (0, 0)),     # S_col
            pl.BlockSpec((P * A, P * E), lambda i: (0, 0)),     # W_blk
            pl.BlockSpec((P * A, 1), lambda i: (0, 0)),         # b_rep
            pl.BlockSpec((P, P * A), lambda i: (0, 0)),         # H_mat
            pl.BlockSpec((P, P * E), lambda i: (0, 0)),         # P_mat
        ],
        out_specs=pl.BlockSpec((1, tb), lambda i: (0, i)),      # lane-dense output
        compiler_params=pltpu.CompilerParams(
            dimension_semantics=("parallel",),
            vmem_limit_bytes=32 * 1024 * 1024),
    )(emb_flat, wide_row, s_row, s_col, w_blk, b_rep, h_mat, p_mat)

    return out[0, :B]                                           # drop batch padding


def afm_reference(X, emb_tables, sparse_feats, feature_index, params):
    """Pure-JAX (XLA) reference matching the PyTorch forward."""
    embs = [emb_tables[name][X[:, feature_index[name]].astype(jnp.int32)]
            for name in sparse_feats]
    emb = jnp.stack(embs, axis=1)                          # [B, F, E]
    F = emb.shape[1]
    rows, cols = zip(*itertools.combinations(range(F), 2))
    bi = emb[:, list(rows), :] * emb[:, list(cols), :]     # [B, P, E]
    att = jax.nn.relu(jnp.einsum("bpe,ea->bpa", bi, params["attention_W"])
                      + params["attention_b"])
    logits = jnp.einsum("bpa,a->bp", att, params["projection_h"][:, 0])
    score = jax.nn.softmax(logits, axis=1)
    att_out = jnp.einsum("bp,bpe->be", score, bi)
    afm_logit = att_out @ params["projection_p"]           # [B, 1]
    wide = jax.nn.relu(X @ params["wide_W"] + params["wide_b"])
    return jax.nn.sigmoid(wide + afm_logit)[:, 0]


def xavier_normal(key, shape):
    fan_in, fan_out = shape[0], shape[1]
    std = (2.0 / (fan_in + fan_out)) ** 0.5
    return std * jax.random.normal(key, shape, jnp.float32)


if __name__ == "__main__":
    # Small deterministic configuration; B=200 pads to a single 256-wide tile.
    B = 200
    emb_size = 4           # E
    attention_factor = 8   # A
    feature_columns = [("C1", "sparse"), ("C2", "sparse"),
                       ("C3", "sparse"), ("C4", "sparse"),
                       ("I1", "dense")]
    feat_size = {"C1": 10, "C2": 12, "C3": 8, "C4": 6, "I1": 1}
    D = len(feature_columns)
    sparse_feats = [name for name, t in feature_columns if t == "sparse"]
    feature_index = {name: i for i, name in enumerate(feat_size)}

    key = jax.random.PRNGKey(0)
    keys = jax.random.split(key, 16)

    params = {
        "attention_W": xavier_normal(keys[0], (emb_size, attention_factor)),
        "attention_b": jnp.zeros((attention_factor,), jnp.float32),
        "projection_h": xavier_normal(keys[1], (attention_factor, 1)),
        "projection_p": xavier_normal(keys[2], (emb_size, 1)),
        "wide_W": 1e-5 * jax.random.normal(keys[3], (D, 1), jnp.float32),
        "wide_b": jax.random.uniform(keys[4], (1,), jnp.float32,
                                     -1.0 / D ** 0.5, 1.0 / D ** 0.5),
    }

    # Embedding tables (torch nn.Embedding default: N(0, 1)).
    emb_tables = {
        name: jax.random.normal(keys[5 + i], (feat_size[name], emb_size),
                                jnp.float32)
        for i, name in enumerate(sparse_feats)
    }

    # Inputs: sparse columns hold integer ids stored as float (like the torch
    # model which does X[:, idx].long()); dense column holds floats.
    xk = jax.random.split(keys[15], D)
    cols = []
    for i, (name, t) in enumerate(feature_columns):
        if t == "sparse":
            ids = jax.random.randint(xk[i], (B,), 0, feat_size[name])
            cols.append(ids.astype(jnp.float32))
        else:
            cols.append(jax.random.normal(xk[i], (B,), jnp.float32))
    X = jnp.stack(cols, axis=1)                            # [B, D]

    out = afm_forward(X, emb_tables, sparse_feats, feature_index, params)
    out = jax.block_until_ready(out)
    ref = afm_reference(X, emb_tables, sparse_feats, feature_index, params)

    assert out.shape == (B,), out.shape
    assert bool(jnp.all(jnp.isfinite(out)))
    max_err = float(jnp.max(jnp.abs(out - ref)))
    assert max_err < 2e-3, max_err    # approx softmax-reciprocal tolerance
    print("KERNEL_OK")
</pallas_src>

<mosaic_0001>
module attributes {stable_mosaic.version = 11 : i64} {
  func.func @afm_kernel(%arg0: i32, %arg1: memref<16x256xf32, #tpu.memory_space<vmem>>, %arg2: memref<1x256xf32, #tpu.memory_space<vmem>>, %arg3: memref<24x16xf32, #tpu.memory_space<vmem>>, %arg4: memref<24x16xf32, #tpu.memory_space<vmem>>, %arg5: memref<48x24xf32, #tpu.memory_space<vmem>>, %arg6: memref<48x1xf32, #tpu.memory_space<vmem>>, %arg7: memref<6x48xf32, #tpu.memory_space<vmem>>, %arg8: memref<6x24xf32, #tpu.memory_space<vmem>>, %arg9: memref<1x256xf32, #tpu.memory_space<vmem>>) attributes {dimension_semantics = [#tpu.dimension_semantics<parallel>], iteration_bounds = array<i64: 1>, scalar_prefetch = 0 : i64, scratch_operands = 0 : i64, tpu.core_type = #tpu.core_type<tc>, window_params = [{transform_indices = @transform_0, window_bounds = array<i64: 16, 256>}, {transform_indices = @transform_1, window_bounds = array<i64: 1, 256>}, {pipeline_mode = #tpu.pipeline_mode<synchronous>, transform_indices = @transform_2, window_bounds = array<i64: 24, 16>}, {pipeline_mode = #tpu.pipeline_mode<synchronous>, transform_indices = @transform_3, window_bounds = array<i64: 24, 16>}, {pipeline_mode = #tpu.pipeline_mode<synchronous>, transform_indices = @transform_4, window_bounds = array<i64: 48, 24>}, {pipeline_mode = #tpu.pipeline_mode<synchronous>, transform_indices = @transform_5, window_bounds = array<i64: 48, 1>}, {pipeline_mode = #tpu.pipeline_mode<synchronous>, transform_indices = @transform_6, window_bounds = array<i64: 6, 48>}, {pipeline_mode = #tpu.pipeline_mode<synchronous>, transform_indices = @transform_7, window_bounds = array<i64: 6, 24>}, {transform_indices = @transform_8, window_bounds = array<i64: 1, 256>}]} {
    %c0 = arith.constant 0 : index
    %c0_0 = arith.constant 0 : index
    %0 = vector.load %arg1[%c0, %c0_0] : memref<16x256xf32, #tpu.memory_space<vmem>>, vector<16x256xf32>
    %c0_1 = arith.constant 0 : index
    %c0_2 = arith.constant 0 : index
    %1 = vector.load %arg2[%c0_1, %c0_2] : memref<1x256xf32, #tpu.memory_space<vmem>>, vector<1x256xf32>
    %c0_3 = arith.constant 0 : index
    %c0_4 = arith.constant 0 : index
    %2 = vector.load %arg3[%c0_3, %c0_4] : memref<24x16xf32, #tpu.memory_space<vmem>>, vector<24x16xf32>
    %cst = arith.constant dense<0.000000e+00> : vector<24x256xf32>
    %3 = tpu.matmul %2, %0, %cst {dimension_numbers = #tpu.dot_dimension_numbers<[1], [0], [0], [1], [0, 0, 1, 1], [], []>} : vector<24x16xf32>, vector<16x256xf32>, vector<24x256xf32> -> vector<24x256xf32>
    %c0_5 = arith.constant 0 : index
    %c0_6 = arith.constant 0 : index
    %4 = vector.load %arg4[%c0_5, %c0_6] : memref<24x16xf32, #tpu.memory_space<vmem>>, vector<24x16xf32>
    %cst_7 = arith.constant dense<0.000000e+00> : vector<24x256xf32>
    %5 = tpu.matmul %4, %0, %cst_7 {dimension_numbers = #tpu.dot_dimension_numbers<[1], [0], [0], [1], [0, 0, 1, 1], [], []>} : vector<24x16xf32>, vector<16x256xf32>, vector<24x256xf32> -> vector<24x256xf32>
    %6 = arith.mulf %3, %5 : vector<24x256xf32>
    %c0_8 = arith.constant 0 : index
    %c0_9 = arith.constant 0 : index
    %7 = vector.load %arg5[%c0_8, %c0_9] : memref<48x24xf32, #tpu.memory_space<vmem>>, vector<48x24xf32>
    %cst_10 = arith.constant dense<0.000000e+00> : vector<48x256xf32>
    %8 = tpu.matmul %7, %6, %cst_10 {dimension_numbers = #tpu.dot_dimension_numbers<[1], [0], [0], [1], [0, 0, 1, 1], [], []>} : vector<48x24xf32>, vector<24x256xf32>, vector<48x256xf32> -> vector<48x256xf32>
    %c0_11 = arith.constant 0 : index
    %c0_12 = arith.constant 0 : index
    %9 = vector.load %arg6[%c0_11, %c0_12] : memref<48x1xf32, #tpu.memory_space<vmem>>, vector<48x1xf32>
    %10 = vector.broadcast %9 : vector<48x1xf32> to vector<48x256xf32>
    %11 = arith.addf %8, %10 : vector<48x256xf32>
    %cst_13 = arith.constant 0.000000e+00 : f32
    %12 = vector.broadcast %cst_13 : f32 to vector<48x256xf32>
    %13 = arith.maximumf %11, %12 : vector<48x256xf32>
    %c0_14 = arith.constant 0 : index
    %c0_15 = arith.constant 0 : index
    %14 = vector.load %arg7[%c0_14, %c0_15] : memref<6x48xf32, #tpu.memory_space<vmem>>, vector<6x48xf32>
    %cst_16 = arith.constant dense<0.000000e+00> : vector<6x256xf32>
    %15 = tpu.matmul %14, %13, %cst_16 {dimension_numbers = #tpu.dot_dimension_numbers<[1], [0], [0], [1], [0, 0, 1, 1], [], []>} : vector<6x48xf32>, vector<48x256xf32>, vector<6x256xf32> -> vector<6x256xf32>
    %cst_17 = arith.constant dense<0xFF800000> : vector<256xf32>
    %16 = vector.multi_reduction <maximumf>, %15, %cst_17 [0] : vector<6x256xf32> to vector<256xf32>
    %17 = vector.shape_cast %16 : vector<256xf32> to vector<1x256xf32>
    %18 = vector.broadcast %17 : vector<1x256xf32> to vector<6x256xf32>
    %19 = arith.subf %15, %18 : vector<6x256xf32>
    %20 = math.exp %19 : vector<6x256xf32>
    %cst_18 = arith.constant dense<0.000000e+00> : vector<256xf32>
    %21 = vector.multi_reduction <add>, %20, %cst_18 [0] : vector<6x256xf32> to vector<256xf32>
    %22 = vector.shape_cast %21 : vector<256xf32> to vector<1x256xf32>
    %23 = tpu.reciprocal %22 {approx = true} : vector<1x256xf32> -> vector<1x256xf32>
    %24 = vector.broadcast %23 : vector<1x256xf32> to vector<6x256xf32>
    %25 = arith.mulf %20, %24 : vector<6x256xf32>
    %c0_19 = arith.constant 0 : index
    %c0_20 = arith.constant 0 : index
    %26 = vector.load %arg8[%c0_19, %c0_20] : memref<6x24xf32, #tpu.memory_space<vmem>>, vector<6x24xf32>
    %cst_21 = arith.constant dense<0.000000e+00> : vector<6x256xf32>
    %27 = tpu.matmul %26, %6, %cst_21 {dimension_numbers = #tpu.dot_dimension_numbers<[1], [0], [0], [1], [0, 0, 1, 1], [], []>} : vector<6x24xf32>, vector<24x256xf32>, vector<6x256xf32> -> vector<6x256xf32>
    %28 = arith.mulf %25, %27 : vector<6x256xf32>
    %cst_22 = arith.constant dense<0.000000e+00> : vector<256xf32>
    %29 = vector.multi_reduction <add>, %28, %cst_22 [0] : vector<6x256xf32> to vector<256xf32>
    %30 = vector.shape_cast %29 : vector<256xf32> to vector<1x256xf32>
    %31 = arith.addf %1, %30 : vector<1x256xf32>
    %cst_23 = arith.constant 0.000000e+00 : f32
    %32 = vector.broadcast %cst_23 : f32 to vector<1x256xf32>
    %33 = arith.subf %32, %31 : vector<1x256xf32>
    %34 = math.exp %33 : vector<1x256xf32>
    %cst_24 = arith.constant 1.000000e+00 : f32
    %35 = vector.broadcast %cst_24 : f32 to vector<1x256xf32>
    %36 = arith.addf %35, %34 : vector<1x256xf32>
    %cst_25 = arith.constant 1.000000e+00 : f32
    %37 = vector.broadcast %cst_25 : f32 to vector<1x256xf32>
    %38 = arith.divf %37, %36 : vector<1x256xf32>
    %c0_26 = arith.constant 0 : index
    %c0_27 = arith.constant 0 : index
    %39 = vector.load %arg9[%c0_26, %c0_27] : memref<1x256xf32, #tpu.memory_space<vmem>>, vector<1x256xf32>
    tpu.vector_store %arg9[%c0_26, %c0_27], %38 {strides = array<i32>} : memref<1x256xf32, #tpu.memory_space<vmem>>, vector<1x256xf32>,
    return
  }
  func.func @transform_0(%arg0: i32) -> (i32, i32) {
    %c0_i32 = arith.constant 0 : i32
    %c0_i32_0 = arith.constant 0 : i32
    return %c0_i32, %arg0 : i32, i32
  }
  func.func @transform_1(%arg0: i32) -> (i32, i32) {
    %c0_i32 = arith.constant 0 : i32
    %c0_i32_0 = arith.constant 0 : i32
    return %c0_i32, %arg0 : i32, i32
  }
  func.func @transform_2(%arg0: i32) -> (i32, i32) {
    %c0_i32 = arith.constant 0 : i32
    %c0_i32_0 = arith.constant 0 : i32
    %c0_i32_1 = arith.constant 0 : i32
    return %c0_i32, %c0_i32_0 : i32, i32
  }
  func.func @transform_3(%arg0: i32) -> (i32, i32) {
    %c0_i32 = arith.constant 0 : i32
    %c0_i32_0 = arith.constant 0 : i32
    %c0_i32_1 = arith.constant 0 : i32
    return %c0_i32, %c0_i32_0 : i32, i32
  }
  func.func @transform_4(%arg0: i32) -> (i32, i32) {
    %c0_i32 = arith.constant 0 : i32
    %c0_i32_0 = arith.constant 0 : i32
    %c0_i32_1 = arith.constant 0 : i32
    return %c0_i32, %c0_i32_0 : i32, i32
  }
  func.func @transform_5(%arg0: i32) -> (i32, i32) {
    %c0_i32 = arith.constant 0 : i32
    %c0_i32_0 = arith.constant 0 : i32
    %c0_i32_1 = arith.constant 0 : i32
    return %c0_i32, %c0_i32_0 : i32, i32
  }
  func.func @transform_6(%arg0: i32) -> (i32, i32) {
    %c0_i32 = arith.constant 0 : i32
    %c0_i32_0 = arith.constant 0 : i32
    %c0_i32_1 = arith.constant 0 : i32
    return %c0_i32, %c0_i32_0 : i32, i32
  }
  func.func @transform_7(%arg0: i32) -> (i32, i32) {
    %c0_i32 = arith.constant 0 : i32
    %c0_i32_0 = arith.constant 0 : i32
    %c0_i32_1 = arith.constant 0 : i32
    return %c0_i32, %c0_i32_0 : i32, i32
  }
  func.func @transform_8(%arg0: i32) -> (i32, i32) {
    %c0_i32 = arith.constant 0 : i32
    %c0_i32_0 = arith.constant 0 : i32
    return %c0_i32, %arg0 : i32, i32
  }
}

</mosaic_0001>

<llo_original>
// kernel: tpu_custom_call.1
$region0: #{tpu_custom_call.1}
  #allocation0 [shape = 'u32[]', space=smem, size = 0x4, offset = 0x4, fixed_abs, tag = 'smem constant byte address 0x4 - core index']
  #allocation1 [shape = 'u32[144,128]{1,0:T(1,128)}', space=vmem, size = 0x12000, scoped, tag = 'internal scratch']
  %s0 = inlined_call_operand.vmem [shape: f32[16,256], index: 0, kind: input, shape index: {}]
  %s1 = inlined_call_operand.vmem [shape: f32[1,256], index: 1, kind: input, shape index: {}]
  %s2 = inlined_call_operand.vmem [shape: f32[24,16], index: 2, kind: input, shape index: {}]
  %s3 = inlined_call_operand.vmem [shape: f32[24,16], index: 3, kind: input, shape index: {}]
  %s4 = inlined_call_operand.vmem [shape: f32[48,24], index: 4, kind: input, shape index: {}]
  %s5 = inlined_call_operand.vmem [shape: f32[48,1], index: 5, kind: input, shape index: {}]
  %s6 = inlined_call_operand.vmem [shape: f32[6,48], index: 6, kind: input, shape index: {}]
  %s7 = inlined_call_operand.vmem [shape: f32[6,24], index: 7, kind: input, shape index: {}]
  %s8 = inlined_call_operand.hbm [shape: f32[1,256], index: 8, kind: output, shape index: {}]
  %s9 = sld [smem:[#allocation0]]
  $region42: #{tpu_custom_call.1} parent=0
    _
  %s11 = ssub.s32 1, %s9
  %s12 = scalar_select 0, %s11, %s9
  $region1: #{tpu_custom_call.1} parent=0
    #allocation2 [shape = 'u8[1024]{0}', space=vmem, size = 0x400, scoped, tag = 'output window, operand 0, single buffered']
    #allocation3 [shape = 's32[1]{0}', space=sflag, size = 0x4, scoped, tag = 'scoped memory for tpu_custom_call.1']
    %13 = vsyncpa [#allocation3], 0
    // Predicated region
    $region2: #{tpu_custom_call.1} parent=1 // pred_check
      _
    $region3: #{tpu_custom_call.1} parent=1 // pred_check_branch
      %15 = sbr.rel (0) target = $region5
    $region4: #{tpu_custom_call.1} parent=1 // pred_region
      _
    $region5: #{tpu_custom_call.1} parent=1 // pred_fallthru
      _
    // Predicated region
    $region6: #{tpu_custom_call.1} parent=1 // pred_check
      _
    $region7: #{tpu_custom_call.1} parent=1 // pred_check_branch
      %17 = sbr.rel (0) target = $region9
    $region8: #{tpu_custom_call.1} parent=1 // pred_region
      _
    $region9: #{tpu_custom_call.1} parent=1 // pred_fallthru
      _
    // Predicated region
    $region10: #{tpu_custom_call.1} parent=1 // pred_check
      _
    $region11: #{tpu_custom_call.1} parent=1 // pred_check_branch
      %19 = sbr.rel (0) target = $region13
    $region12: #{tpu_custom_call.1} parent=1 // pred_region
      _
    $region13: #{tpu_custom_call.1} parent=1 // pred_fallthru
      _
    // Predicated region
    $region14: #{tpu_custom_call.1} parent=1 // pred_check
      _
    $region15: #{tpu_custom_call.1} parent=1 // pred_check_branch
      %21 = sbr.rel (0) target = $region17
    $region16: #{tpu_custom_call.1} parent=1 // pred_region
      _
    $region17: #{tpu_custom_call.1} parent=1 // pred_fallthru
      _
    // Predicated region
    $region18: #{tpu_custom_call.1} parent=1 // pred_check
      _
    $region19: #{tpu_custom_call.1} parent=1 // pred_check_branch
      %23 = sbr.rel (0) target = $region21
    $region20: #{tpu_custom_call.1} parent=1 // pred_region
      _
    $region21: #{tpu_custom_call.1} parent=1 // pred_fallthru
      _
    // Predicated region
    $region22: #{tpu_custom_call.1} parent=1 // pred_check
      _
    $region23: #{tpu_custom_call.1} parent=1 // pred_check_branch
      %25 = sbr.rel (0) target = $region25
    $region24: #{tpu_custom_call.1} parent=1 // pred_region
      _
    $region25: #{tpu_custom_call.1} parent=1 // pred_fallthru
      _
    // Predicated region
    $region26: #{tpu_custom_call.1} parent=1 // pred_check
      _
    $region27: #{tpu_custom_call.1} parent=1 // pred_check_branch
      %27 = sbr.rel (0) target = $region29
    $region28: #{tpu_custom_call.1} parent=1 // pred_region
      _
    $region29: #{tpu_custom_call.1} parent=1 // pred_fallthru
      _
    // Predicated region
    $region30: #{tpu_custom_call.1} parent=1 // pred_check
      _
    $region31: #{tpu_custom_call.1} parent=1 // pred_check_branch
      %29 = sbr.rel (0) target = $region33
    $region32: #{tpu_custom_call.1} parent=1 // pred_region
      _
    $region33: #{tpu_custom_call.1} parent=1 // pred_fallthru
      _
    %v30 = vld [vmem:[%s0] sm:$0xff]
    %v31 = vld [vmem:[%s0 + $0x8] sm:$0xff]
    %v32 = vld [vmem:[%s0 + $0x10] sm:$0xff]
    %v33 = vld [vmem:[%s0 + $0x18] sm:$0xff]
    %v34 = vld [vmem:[%s1] sm:$0x3]
    %v35 = vld [vmem:[%s2] sm:$0xff]
    %v36 = vld [vmem:[%s2 + $0x8] sm:$0xff]
    %v37 = vld [vmem:[%s2 + $0x10] sm:$0xff]
    %vm38 = vcmask 130048
    %v40 = vsel %vm38, %v35, 0
    %v43 = vsel %vm38, %v36, 0
    %v46 = vsel %vm38, %v37, 0
    %48 = vmatprep.subr.mxu0 %v31
    %49 = vmatpush1.msra.mxu0 %v30
    %50 = vmatprep.subr.mxu0 %v33
    %51 = vmatpush1.msra.mxu0 %v32
    %52 = vmatprep.subr.mxu0 0.0
    %53 = vmatpush1.msra.mxu0 0.0
    %54 = vmatprep.subr.mxu0 0.0
    %55 = vmatpush1.msra.mxu0 0.0
    %56 = vmatprep.subr.mxu0 0.0
    %57 = vmatpush1.msra.mxu0 0.0
    %58 = vmatprep.subr.mxu0 0.0
    %59 = vmatpush1.msra.mxu0 0.0
    %60 = vmatprep.subr.mxu0 0.0
    %61 = vmatpush1.msra.mxu0 0.0
    %62 = vmatprep.subr.mxu0 0.0
    %63 = vmatpush1.msra.mxu0 0.0
    %64 = vmatprep.subr.mxu0 0.0
    %65 = vmatpush1.msra.mxu0 0.0
    %66 = vmatprep.subr.mxu0 0.0
    %67 = vmatpush1.msra.mxu0 0.0
    %68 = vmatprep.subr.mxu0 0.0
    %69 = vmatpush1.msra.mxu0 0.0
    %70 = vmatprep.subr.mxu0 0.0
    %71 = vmatpush1.msra.mxu0 0.0
    %72 = vmatprep.subr.mxu0 0.0
    %73 = vmatpush1.msra.mxu0 0.0
    %74 = vmatprep.subr.mxu0 0.0
    %75 = vmatpush1.msra.mxu0 0.0
    %76 = vmatprep.subr.mxu0 0.0
    %77 = vmatpush1.msra.mxu0 0.0
    %78 = vmatprep.subr.mxu0 0.0
    %79 = vmatpush1.msra.mxu0 0.0
    %80 = vmatprep.subr.mxu0 0.0
    %81 = vmatpush1.msra.mxu0 0.0
    %82 = vmatprep.subr.mxu0 0.0
    %83 = vmatpush1.msra.mxu0 0.0
    %84 = vmatprep.subr.mxu0 0.0
    %85 = vmatpush1.msra.mxu0 0.0
    %86 = vmatprep.subr.mxu0 0.0
    %87 = vmatpush1.msra.mxu0 0.0
    %88 = vmatprep.subr.mxu0 0.0
    %89 = vmatpush1.msra.mxu0 0.0
    %90 = vmatprep.subr.mxu0 0.0
    %91 = vmatpush1.msra.mxu0 0.0
    %92 = vmatprep.subr.mxu0 0.0
    %93 = vmatpush1.msra.mxu0 0.0
    %94 = vmatprep.subr.mxu0 0.0
    %95 = vmatpush1.msra.mxu0 0.0
    %96 = vmatprep.subr.mxu0 0.0
    %97 = vmatpush1.msra.mxu0 0.0
    %98 = vmatprep.subr.mxu0 0.0
    %99 = vmatpush1.msra.mxu0 0.0
    %100 = vmatprep.subr.mxu0 0.0
    %101 = vmatpush1.msra.mxu0 0.0
    %102 = vmatprep.subr.mxu0 0.0
    %103 = vmatpush1.msra.mxu0 0.0
    %104 = vmatprep.subr.mxu0 0.0
    %105 = vmatpush1.msra.mxu0 0.0
    %106 = vmatprep.subr.mxu0 0.0
    %107 = vmatpush1.msra.mxu0 0.0
    %108 = vmatprep.subr.mxu0 0.0
    %109 = vmatpush1.msra.mxu0 0.0
    %110 = vmatprep.subr.mxu0 0.0
    %111 = vmatpush1.msra.mxu0 0.0
    %112 = vmatprep.mubr.f32.mxu0 0.0
    %113 = vmatmul.mubr.f32.gmra.mrb[0].mxu0 %v40
    %v114 = vpop.f32.mrb[0].mxu0
    %v115 = vadd.f32 0.0, %v114
    %v116 = vpop.f32.mrb[0].mxu0
    %v117 = vadd.f32 0.0, %v116
    %118 = vmatprep.mubr.f32.mxu0 0.0
    %119 = vmatmul.mubr.f32.gmra.mrb[0].mxu0 %v43
    %v120 = vpop.f32.mrb[0].mxu0
    %v121 = vadd.f32 0.0, %v120
    %v122 = vpop.f32.mrb[0].mxu0
    %v123 = vadd.f32 0.0, %v122
    %124 = vmatprep.mubr.f32.mxu0 0.0
    %125 = vmatmul.mubr.f32.gmra.mrb[0].mxu0 %v46
    %v126 = vpop.f32.mrb[0].mxu0
    %v127 = vadd.f32 0.0, %v126
    %v128 = vpop.f32.mrb[0].mxu0
    %v129 = vadd.f32 0.0, %v128
    %130 = vdwg.mxu0
    %v131 = vld [vmem:[%s3] sm:$0xff]
    %v132 = vld [vmem:[%s3 + $0x8] sm:$0xff]
    %v133 = vld [vmem:[%s3 + $0x10] sm:$0xff]
    %v135 = vsel %vm38, %v131, 0
    %v138 = vsel %vm38, %v132, 0
    %v141 = vsel %vm38, %v133, 0
    %143 = vmatprep.subr.mxu0 %v31
    %144 = vmatpush1.msra.mxu0 %v30
    %145 = vmatprep.subr.mxu0 %v33
    %146 = vmatpush1.msra.mxu0 %v32
    %147 = vmatprep.subr.mxu0 0.0
    %148 = vmatpush1.msra.mxu0 0.0
    %149 = vmatprep.subr.mxu0 0.0
    %150 = vmatpush1.msra.mxu0 0.0
    %151 = vmatprep.subr.mxu0 0.0
    %152 = vmatpush1.msra.mxu0 0.0
    %153 = vmatprep.subr.mxu0 0.0
    %154 = vmatpush1.msra.mxu0 0.0
    %155 = vmatprep.subr.mxu0 0.0
    %156 = vmatpush1.msra.mxu0 0.0
    %157 = vmatprep.subr.mxu0 0.0
    %158 = vmatpush1.msra.mxu0 0.0
    %159 = vmatprep.subr.mxu0 0.0
    %160 = vmatpush1.msra.mxu0 0.0
    %161 = vmatprep.subr.mxu0 0.0
    %162 = vmatpush1.msra.mxu0 0.0
    %163 = vmatprep.subr.mxu0 0.0
    %164 = vmatpush1.msra.mxu0 0.0
    %165 = vmatprep.subr.mxu0 0.0
    %166 = vmatpush1.msra.mxu0 0.0
    %167 = vmatprep.subr.mxu0 0.0
    %168 = vmatpush1.msra.mxu0 0.0
    %169 = vmatprep.subr.mxu0 0.0
    %170 = vmatpush1.msra.mxu0 0.0
    %171 = vmatprep.subr.mxu0 0.0
    %172 = vmatpush1.msra.mxu0 0.0
    %173 = vmatprep.subr.mxu0 0.0
    %174 = vmatpush1.msra.mxu0 0.0
    %175 = vmatprep.subr.mxu0 0.0
    %176 = vmatpush1.msra.mxu0 0.0
    %177 = vmatprep.subr.mxu0 0.0
    %178 = vmatpush1.msra.mxu0 0.0
    %179 = vmatprep.subr.mxu0 0.0
    %180 = vmatpush1.msra.mxu0 0.0
    %181 = vmatprep.subr.mxu0 0.0
    %182 = vmatpush1.msra.mxu0 0.0
    %183 = vmatprep.subr.mxu0 0.0
    %184 = vmatpush1.msra.mxu0 0.0
    %185 = vmatprep.subr.mxu0 0.0
    %186 = vmatpush1.msra.mxu0 0.0
    %187 = vmatprep.subr.mxu0 0.0
    %188 = vmatpush1.msra.mxu0 0.0
    %189 = vmatprep.subr.mxu0 0.0
    %190 = vmatpush1.msra.mxu0 0.0
    %191 = vmatprep.subr.mxu0 0.0
    %192 = vmatpush1.msra.mxu0 0.0
    %193 = vmatprep.subr.mxu0 0.0
    %194 = vmatpush1.msra.mxu0 0.0
    %195 = vmatprep.subr.mxu0 0.0
    %196 = vmatpush1.msra.mxu0 0.0
    %197 = vmatprep.subr.mxu0 0.0
    %198 = vmatpush1.msra.mxu0 0.0
    %199 = vmatprep.subr.mxu0 0.0
    %200 = vmatpush1.msra.mxu0 0.0
    %201 = vmatprep.subr.mxu0 0.0
    %202 = vmatpush1.msra.mxu0 0.0
    %203 = vmatprep.subr.mxu0 0.0
    %204 = vmatpush1.msra.mxu0 0.0
    %205 = vmatprep.subr.mxu0 0.0
    %206 = vmatpush1.msra.mxu0 0.0
    %207 = vmatprep.mubr.f32.mxu0 0.0
    %208 = vmatmul.mubr.f32.gmra.mrb[0].mxu0 %v135
    %v209 = vpop.f32.mrb[0].mxu0
    %v210 = vadd.f32 0.0, %v209
    %v211 = vpop.f32.mrb[0].mxu0
    %v212 = vadd.f32 0.0, %v211
    %213 = vmatprep.mubr.f32.mxu0 0.0
    %214 = vmatmul.mubr.f32.gmra.mrb[0].mxu0 %v138
    %v215 = vpop.f32.mrb[0].mxu0
    %v216 = vadd.f32 0.0, %v215
    %v217 = vpop.f32.mrb[0].mxu0
    %v218 = vadd.f32 0.0, %v217
    %219 = vmatprep.mubr.f32.mxu0 0.0
    %220 = vmatmul.mubr.f32.gmra.mrb[0].mxu0 %v141
    %v221 = vpop.f32.mrb[0].mxu0
    %v222 = vadd.f32 0.0, %v221
    %v223 = vpop.f32.mrb[0].mxu0
    %v224 = vadd.f32 0.0, %v223
    %225 = vdwg.mxu0
    %v226 = vmul.f32 %v115, %v210
    %v227 = vmul.f32 %v117, %v212
    %v228 = vmul.f32 %v121, %v216
    %v229 = vmul.f32 %v123, %v218
    %v230 = vmul.f32 %v127, %v222
    %v231 = vmul.f32 %v129, %v224
    %v232 = vld [vmem:[%s4] sm:$0xff]
    %v233 = vld [vmem:[%s4 + $0x8] sm:$0xff]
    %v234 = vld [vmem:[%s4 + $0x10] sm:$0xff]
    %v235 = vld [vmem:[%s4 + $0x18] sm:$0xff]
    %v236 = vld [vmem:[%s4 + $0x20] sm:$0xff]
    %v237 = vld [vmem:[%s4 + $0x28] sm:$0xff]
    %v238 = vld [vmem:[%s5] sm:$0xff]
    %v239 = vld [vmem:[%s5 + $0x8] sm:$0xff]
    %v240 = vld [vmem:[%s5 + $0x10] sm:$0xff]
    %v241 = vld [vmem:[%s5 + $0x18] sm:$0xff]
    %v242 = vld [vmem:[%s5 + $0x20] sm:$0xff]
    %v243 = vld [vmem:[%s5 + $0x28] sm:$0xff]
    %245 = vset.pattern.permute.xlu0 0
    %246 = vperm.xlu0 %245, %v238
    %v247 = vpop.permute.xlu0 %246
    %250 = vset.pattern.permute.xlu0 0
    %251 = vperm.xlu0 %250, %v239
    %v252 = vpop.permute.xlu0 %251
    %255 = vset.pattern.permute.xlu0 0
    %256 = vperm.xlu0 %255, %v240
    %v257 = vpop.permute.xlu0 %256
    %260 = vset.pattern.permute.xlu0 0
    %261 = vperm.xlu0 %260, %v241
    %v262 = vpop.permute.xlu0 %261
    %265 = vset.pattern.permute.xlu0 0
    %266 = vperm.xlu0 %265, %v242
    %v267 = vpop.permute.xlu0 %266
    %270 = vset.pattern.permute.xlu0 0
    %271 = vperm.xlu0 %270, %v243
    %v272 = vpop.permute.xlu0 %271
    %vm274 = vcmask 195584
    %v276 = vsel %vm274, %v232, 0
    %v279 = vsel %vm274, %v233, 0
    %v282 = vsel %vm274, %v234, 0
    %v285 = vsel %vm274, %v235, 0
    %v288 = vsel %vm274, %v236, 0
    %v291 = vsel %vm274, %v237, 0
    %293 = vmatprep.subr.mxu0 %v227
    %294 = vmatpush1.msra.mxu0 %v226
    %295 = vmatprep.subr.mxu0 %v229
    %296 = vmatpush1.msra.mxu0 %v228
    %297 = vmatprep.subr.mxu0 %v231
    %298 = vmatpush1.msra.mxu0 %v230
    %299 = vmatprep.subr.mxu0 0.0
    %300 = vmatpush1.msra.mxu0 0.0
    %301 = vmatprep.subr.mxu0 0.0
    %302 = vmatpush1.msra.mxu0 0.0
    %303 = vmatprep.subr.mxu0 0.0
    %304 = vmatpush1.msra.mxu0 0.0
    %305 = vmatprep.subr.mxu0 0.0
    %306 = vmatpush1.msra.mxu0 0.0
    %307 = vmatprep.subr.mxu0 0.0
    %308 = vmatpush1.msra.mxu0 0.0
    %309 = vmatprep.subr.mxu0 0.0
    %310 = vmatpush1.msra.mxu0 0.0
    %311 = vmatprep.subr.mxu0 0.0
    %312 = vmatpush1.msra.mxu0 0.0
    %313 = vmatprep.subr.mxu0 0.0
    %314 = vmatpush1.msra.mxu0 0.0
    %315 = vmatprep.subr.mxu0 0.0
    %316 = vmatpush1.msra.mxu0 0.0
    %317 = vmatprep.subr.mxu0 0.0
    %318 = vmatpush1.msra.mxu0 0.0
    %319 = vmatprep.subr.mxu0 0.0
    %320 = vmatpush1.msra.mxu0 0.0
    %321 = vmatprep.subr.mxu0 0.0
    %322 = vmatpush1.msra.mxu0 0.0
    %323 = vmatprep.subr.mxu0 0.0
    %324 = vmatpush1.msra.mxu0 0.0
    %325 = vmatprep.subr.mxu0 0.0
    %326 = vmatpush1.msra.mxu0 0.0
    %327 = vmatprep.subr.mxu0 0.0
    %328 = vmatpush1.msra.mxu0 0.0
    %329 = vmatprep.subr.mxu0 0.0
    %330 = vmatpush1.msra.mxu0 0.0
    %331 = vmatprep.subr.mxu0 0.0
    %332 = vmatpush1.msra.mxu0 0.0
    %333 = vmatprep.subr.mxu0 0.0
    %334 = vmatpush1.msra.mxu0 0.0
    %335 = vmatprep.subr.mxu0 0.0
    %336 = vmatpush1.msra.mxu0 0.0
    %337 = vmatprep.subr.mxu0 0.0
    %338 = vmatpush1.msra.mxu0 0.0
    %339 = vmatprep.subr.mxu0 0.0
    %340 = vmatpush1.msra.mxu0 0.0
    %341 = vmatprep.subr.mxu0 0.0
    %342 = vmatpush1.msra.mxu0 0.0
    %343 = vmatprep.subr.mxu0 0.0
    %344 = vmatpush1.msra.mxu0 0.0
    %345 = vmatprep.subr.mxu0 0.0
    %346 = vmatpush1.msra.mxu0 0.0
    %347 = vmatprep.subr.mxu0 0.0
    %348 = vmatpush1.msra.mxu0 0.0
    %349 = vmatprep.subr.mxu0 0.0
    %350 = vmatpush1.msra.mxu0 0.0
    %351 = vmatprep.subr.mxu0 0.0
    %352 = vmatpush1.msra.mxu0 0.0
    %353 = vmatprep.subr.mxu0 0.0
    %354 = vmatpush1.msra.mxu0 0.0
    %355 = vmatprep.subr.mxu0 0.0
    %356 = vmatpush1.msra.mxu0 0.0
    %357 = vmatprep.mubr.f32.mxu0 0.0
    %358 = vmatmul.mubr.f32.gmra.mrb[0].mxu0 %v276
    %v359 = vpop.f32.mrb[0].mxu0
    %v360 = vadd.f32 %v247, %v359
    %v361 = vpop.f32.mrb[0].mxu0
    %v362 = vadd.f32 %v247, %v361
    %363 = vmatprep.mubr.f32.mxu0 0.0
    %364 = vmatmul.mubr.f32.gmra.mrb[0].mxu0 %v279
    %v365 = vpop.f32.mrb[0].mxu0
    %v366 = vadd.f32 %v252, %v365
    %v367 = vpop.f32.mrb[0].mxu0
    %v368 = vadd.f32 %v252, %v367
    %369 = vmatprep.mubr.f32.mxu0 0.0
    %370 = vmatmul.mubr.f32.gmra.mrb[0].mxu0 %v282
    %v371 = vpop.f32.mrb[0].mxu0
    %v372 = vadd.f32 %v257, %v371
    %v373 = vpop.f32.mrb[0].mxu0
    %v374 = vadd.f32 %v257, %v373
    %375 = vmatprep.mubr.f32.mxu0 0.0
    %376 = vmatmul.mubr.f32.gmra.mrb[0].mxu0 %v285
    %v377 = vpop.f32.mrb[0].mxu0
    %v378 = vadd.f32 %v262, %v377
    %v379 = vpop.f32.mrb[0].mxu0
    %v380 = vadd.f32 %v262, %v379
    %381 = vmatprep.mubr.f32.mxu0 0.0
    %382 = vmatmul.mubr.f32.gmra.mrb[0].mxu0 %v288
    %v383 = vpop.f32.mrb[0].mxu0
    %v384 = vadd.f32 %v267, %v383
    %v385 = vpop.f32.mrb[0].mxu0
    %v386 = vadd.f32 %v267, %v385
    %387 = vmatprep.mubr.f32.mxu0 0.0
    %388 = vmatmul.mubr.f32.gmra.mrb[0].mxu0 %v291
    %v389 = vpop.f32.mrb[0].mxu0
    %v390 = vadd.f32 %v272, %v389
    %v391 = vpop.f32.mrb[0].mxu0
    %v392 = vadd.f32 %v272, %v391
    %393 = vdwg.mxu0
    %v394 = vmax.f32 %v360, 0.0
    %v395 = vmax.f32 %v362, 0.0
    %v396 = vmax.f32 %v366, 0.0
    %v397 = vmax.f32 %v368, 0.0
    %v398 = vmax.f32 %v372, 0.0
    %v399 = vmax.f32 %v374, 0.0
    %v400 = vmax.f32 %v378, 0.0
    %v401 = vmax.f32 %v380, 0.0
    %v402 = vmax.f32 %v384, 0.0
    %v403 = vmax.f32 %v386, 0.0
    %v404 = vmax.f32 %v390, 0.0
    %v405 = vmax.f32 %v392, 0.0
    %v406 = vld [vmem:[%s6] sm:$0x3f]
    %vm407 = vcmask 392192
    %v409 = vsel %vm407, %v406, 0
    %411 = vmatprep.subr.mxu0 %v395
    %412 = vmatpush1.msra.mxu0 %v394
    %413 = vmatprep.subr.mxu0 %v397
    %414 = vmatpush1.msra.mxu0 %v396
    %415 = vmatprep.subr.mxu0 %v399
    %416 = vmatpush1.msra.mxu0 %v398
    %417 = vmatprep.subr.mxu0 %v401
    %418 = vmatpush1.msra.mxu0 %v400
    %419 = vmatprep.subr.mxu0 %v403
    %420 = vmatpush1.msra.mxu0 %v402
    %421 = vmatprep.subr.mxu0 %v405
    %422 = vmatpush1.msra.mxu0 %v404
    %423 = vmatprep.subr.mxu0 0.0
    %424 = vmatpush1.msra.mxu0 0.0
    %425 = vmatprep.subr.mxu0 0.0
    %426 = vmatpush1.msra.mxu0 0.0
    %427 = vmatprep.subr.mxu0 0.0
    %428 = vmatpush1.msra.mxu0 0.0
    %429 = vmatprep.subr.mxu0 0.0
    %430 = vmatpush1.msra.mxu0 0.0
    %431 = vmatprep.subr.mxu0 0.0
    %432 = vmatpush1.msra.mxu0 0.0
    %433 = vmatprep.subr.mxu0 0.0
    %434 = vmatpush1.msra.mxu0 0.0
    %435 = vmatprep.subr.mxu0 0.0
    %436 = vmatpush1.msra.mxu0 0.0
    %437 = vmatprep.subr.mxu0 0.0
    %438 = vmatpush1.msra.mxu0 0.0
    %439 = vmatprep.subr.mxu0 0.0
    %440 = vmatpush1.msra.mxu0 0.0
    %441 = vmatprep.subr.mxu0 0.0
    %442 = vmatpush1.msra.mxu0 0.0
    %443 = vmatprep.subr.mxu0 0.0
    %444 = vmatpush1.msra.mxu0 0.0
    %445 = vmatprep.subr.mxu0 0.0
    %446 = vmatpush1.msra.mxu0 0.0
    %447 = vmatprep.subr.mxu0 0.0
    %448 = vmatpush1.msra.mxu0 0.0
    %449 = vmatprep.subr.mxu0 0.0
    %450 = vmatpush1.msra.mxu0 0.0
    %451 = vmatprep.subr.mxu0 0.0
    %452 = vmatpush1.msra.mxu0 0.0
    %453 = vmatprep.subr.mxu0 0.0
    %454 = vmatpush1.msra.mxu0 0.0
    %455 = vmatprep.subr.mxu0 0.0
    %456 = vmatpush1.msra.mxu0 0.0
    %457 = vmatprep.subr.mxu0 0.0
    %458 = vmatpush1.msra.mxu0 0.0
    %459 = vmatprep.subr.mxu0 0.0
    %460 = vmatpush1.msra.mxu0 0.0
    %461 = vmatprep.subr.mxu0 0.0
    %462 = vmatpush1.msra.mxu0 0.0
    %463 = vmatprep.subr.mxu0 0.0
    %464 = vmatpush1.msra.mxu0 0.0
    %465 = vmatprep.subr.mxu0 0.0
    %466 = vmatpush1.msra.mxu0 0.0
    %467 = vmatprep.subr.mxu0 0.0
    %468 = vmatpush1.msra.mxu0 0.0
    %469 = vmatprep.subr.mxu0 0.0
    %470 = vmatpush1.msra.mxu0 0.0
    %471 = vmatprep.subr.mxu0 0.0
    %472 = vmatpush1.msra.mxu0 0.0
    %473 = vmatprep.subr.mxu0 0.0
    %474 = vmatpush1.msra.mxu0 0.0
    %475 = vmatprep.mubr.f32.mxu0 0.0
    %476 = vmatmul.mubr.f32.gmra.mrb[0].mxu0 %v409
    %v477 = vpop.f32.mrb[0].mxu0
    %v478 = vadd.f32 0.0, %v477
    %v479 = vpop.f32.mrb[0].mxu0
    %v480 = vadd.f32 0.0, %v479
    %481 = vdwg.mxu0
    %vm482 = vcmask 1045504
    %v483 = vsel %vm482, %v478, -inf
    %v484 = vrot.slane %v483, 4
    %v485 = vmax.f32 %v483, %v484
    %v486 = vrot.slane %v485, 2
    %v487 = vmax.f32 %v485, %v486
    %v488 = vrot.slane %v487, 1
    %v489 = vmax.f32 %v487, %v488
    %v490 = vsel %vm482, %v480, -inf
    %v491 = vrot.slane %v490, 4
    %v492 = vmax.f32 %v490, %v491
    %v493 = vrot.slane %v492, 2
    %v494 = vmax.f32 %v492, %v493
    %v495 = vrot.slane %v494, 1
    %v496 = vmax.f32 %v494, %v495
    %v497 = vsub.f32 %v478, %v489
    %v498 = vsub.f32 %v480, %v496
    %v499 = vmul.f32 %v497, 1.442695
    %v500 = vpow.pop %v499
    %v501 = vmul.f32 %v498, 1.442695
    %v502 = vpow.pop %v501
    %v503 = vsel %vm482, %v500, 0.0
    %v504 = vrot.slane %v503, 4
    %v505 = vadd.f32 %v503, %v504
    %v506 = vrot.slane %v505, 2
    %v507 = vadd.f32 %v505, %v506
    %v508 = vrot.slane %v507, 1
    %v509 = vadd.f32 %v507, %v508
    %v510 = vsel %vm482, %v502, 0.0
    %v511 = vrot.slane %v510, 4
    %v512 = vadd.f32 %v510, %v511
    %v513 = vrot.slane %v512, 2
    %v514 = vadd.f32 %v512, %v513
    %v515 = vrot.slane %v514, 1
    %v516 = vadd.f32 %v514, %v515
    %v517 = vrcp.pop %v509
    %v518 = vrcp.pop %v516
    %v519 = vmul.f32 %v500, %v517
    %v520 = vmul.f32 %v502, %v518
    %v521 = vld [vmem:[%s7] sm:$0x3f]
    %v523 = vsel %vm274, %v521, 0
    %525 = vmatprep.subr.mxu0 %v227
    %526 = vmatpush1.msra.mxu0 %v226
    %527 = vmatprep.subr.mxu0 %v229
    %528 = vmatpush1.msra.mxu0 %v228
    %529 = vmatprep.subr.mxu0 %v231
    %530 = vmatpush1.msra.mxu0 %v230
    %531 = vmatprep.subr.mxu0 0.0
    %532 = vmatpush1.msra.mxu0 0.0
    %533 = vmatprep.subr.mxu0 0.0
    %534 = vmatpush1.msra.mxu0 0.0
    %535 = vmatprep.subr.mxu0 0.0
    %536 = vmatpush1.msra.mxu0 0.0
    %537 = vmatprep.subr.mxu0 0.0
    %538 = vmatpush1.msra.mxu0 0.0
    %539 = vmatprep.subr.mxu0 0.0
    %540 = vmatpush1.msra.mxu0 0.0
    %541 = vmatprep.subr.mxu0 0.0
    %542 = vmatpush1.msra.mxu0 0.0
    %543 = vmatprep.subr.mxu0 0.0
    %544 = vmatpush1.msra.mxu0 0.0
    %545 = vmatprep.subr.mxu0 0.0
    %546 = vmatpush1.msra.mxu0 0.0
    %547 = vmatprep.subr.mxu0 0.0
    %548 = vmatpush1.msra.mxu0 0.0
    %549 = vmatprep.subr.mxu0 0.0
    %550 = vmatpush1.msra.mxu0 0.0
    %551 = vmatprep.subr.mxu0 0.0
    %552 = vmatpush1.msra.mxu0 0.0
    %553 = vmatprep.subr.mxu0 0.0
    %554 = vmatpush1.msra.mxu0 0.0
    %555 = vmatprep.subr.mxu0 0.0
    %556 = vmatpush1.msra.mxu0 0.0
    %557 = vmatprep.subr.mxu0 0.0
    %558 = vmatpush1.msra.mxu0 0.0
    %559 = vmatprep.subr.mxu0 0.0
    %560 = vmatpush1.msra.mxu0 0.0
    %561 = vmatprep.subr.mxu0 0.0
    %562 = vmatpush1.msra.mxu0 0.0
    %563 = vmatprep.subr.mxu0 0.0
    %564 = vmatpush1.msra.mxu0 0.0
    %565 = vmatprep.subr.mxu0 0.0
    %566 = vmatpush1.msra.mxu0 0.0
    %567 = vmatprep.subr.mxu0 0.0
    %568 = vmatpush1.msra.mxu0 0.0
    %569 = vmatprep.subr.mxu0 0.0
    %570 = vmatpush1.msra.mxu0 0.0
    %571 = vmatprep.subr.mxu0 0.0
    %572 = vmatpush1.msra.mxu0 0.0
    %573 = vmatprep.subr.mxu0 0.0
    %574 = vmatpush1.msra.mxu0 0.0
    %575 = vmatprep.subr.mxu0 0.0
    %576 = vmatpush1.msra.mxu0 0.0
    %577 = vmatprep.subr.mxu0 0.0
    %578 = vmatpush1.msra.mxu0 0.0
    %579 = vmatprep.subr.mxu0 0.0
    %580 = vmatpush1.msra.mxu0 0.0
    %581 = vmatprep.subr.mxu0 0.0
    %582 = vmatpush1.msra.mxu0 0.0
    %583 = vmatprep.subr.mxu0 0.0
    %584 = vmatpush1.msra.mxu0 0.0
    %585 = vmatprep.subr.mxu0 0.0
    %586 = vmatpush1.msra.mxu0 0.0
    %587 = vmatprep.subr.mxu0 0.0
    %588 = vmatpush1.msra.mxu0 0.0
    %589 = vmatprep.mubr.f32.mxu0 0.0
    %590 = vmatmul.mubr.f32.gmra.mrb[0].mxu0 %v523
    %v591 = vpop.f32.mrb[0].mxu0
    %v592 = vadd.f32 0.0, %v591
    %v593 = vpop.f32.mrb[0].mxu0
    %v594 = vadd.f32 0.0, %v593
    %595 = vdwg.mxu0
    %v596 = vmul.f32 %v519, %v592
    %v597 = vmul.f32 %v520, %v594
    %v598 = vsel %vm482, %v596, 0.0
    %v599 = vrot.slane %v598, 4
    %v600 = vadd.f32 %v598, %v599
    %v601 = vrot.slane %v600, 2
    %v602 = vadd.f32 %v600, %v601
    %v603 = vrot.slane %v602, 1
    %v604 = vadd.f32 %v602, %v603
    %v605 = vsel %vm482, %v597, 0.0
    %v606 = vrot.slane %v605, 4
    %v607 = vadd.f32 %v605, %v606
    %v608 = vrot.slane %v607, 2
    %v609 = vadd.f32 %v607, %v608
    %v610 = vrot.slane %v609, 1
    %v611 = vadd.f32 %v609, %v610
    %v614 = vcombine.low %v604, %v611
    %v616 = vunpack.c.l.s4 1966171168
    %v617 = vunpack.c.0.s8 %v616
    %v618 = vlaneseq
    %v619 = vshrl.u32 %v618, 7
    %v620 = vsub.s32 %v617, %v619
    %v621 = vrot.slane %v614, %v620
    %v623 = vunpack.c.l.s4 1966171168
    %v624 = vunpack.c.0.s8 %v623
    %v625 = vlaneseq
    %v626 = vshrl.u32 %v625, 7
    %v627 = vsub.s32 %v624, %v626
    %v628 = vrot.slane %v621, %v627
    %v630 = vadd.f32 %v34, %v628
    %v631 = vsub.f32 0.0, %v630
    %v632 = vmul.f32 %v631, 1.442695
    %v633 = vpow.pop %v632
    %v634 = vadd.f32 %v633, 1.0
    %v635 = vrcp.pop %v634
    %v636 = vmul.f32 1.0, %v635
    %v637 = vlaneseq
    %vm638 = vcmp.ge.s32.totalorder %v637, 0
    %vm639 = vcmp.lt.s32.totalorder %v637, 256
    %vm640 = vmand %vm638, %vm639
    %641 = vst.msk [vmem:[#allocation2] sm:$0x3] %vm640, %v636
    // Predicated region
    $region34: #{tpu_custom_call.1} parent=1 // pred_check
      _
    $region35: #{tpu_custom_call.1} parent=1 // pred_check_branch
      %643 = sbr.rel (0) target = $region37
    $region36: #{tpu_custom_call.1} parent=1 // pred_region
      %s645 = ssub.s32 32, 32
      %646 = vsyncadd [#allocation3], %s645
      %s648 = sshll.u32 [#allocation2], 4
      %s649 = int_to_ptr.vmem [resolvable:$true] %s648
      %651 = dma.vmem_to_hbm [thread:$0]  %s649, 32, %s8, [#allocation3]
    $region37: #{tpu_custom_call.1} parent=1 // pred_fallthru
      _
    // Predicated region
    $region38: #{tpu_custom_call.1} parent=1 // pred_check
      _
    $region39: #{tpu_custom_call.1} parent=1 // pred_check_branch
      %653 = sbr.rel (0) target = $region41
    $region40: #{tpu_custom_call.1} parent=1 // pred_region
      %654 = dma.done [#allocation3], 32
    $region41: #{tpu_custom_call.1} parent=1 // pred_fallthru
      _
    %655 = vsyncpa [#allocation3], 1

</llo_original>
